<compile_context>
chip_gen: v6e
topology: v6e:2x2x1
jax: 0.10.0
libtpu: 0.0.40
codegen_flags: <defaults>
</compile_context>

<pallas_src>
import jax
import jax.numpy as jnp
from jax import lax
from jax.experimental import pallas as pl
from jax.experimental.pallas import tpu as pltpu


def _patch_embed_kernel(x_ref, w_ref, b_ref, o_ref):
    """One block of (batch * patch-row) rows.

    x_ref: [TB, P, Wo, P*C]  input rows; per output patch column the feature
                             order is (pw, c) and is contiguous in memory.
    w_ref: [P, P*C, E]       conv weight, reordered once on the host.
    b_ref: [1, E]            bias.
    o_ref: [TB, Wo, E]       output patches for this block.
    """
    n_ph = w_ref.shape[0]          # == P (static)
    bias = b_ref[...]              # [1, E]

    def row(i, carry):
        xi = x_ref[i]              # [P, Wo, P*C]  (dynamic leading-dim load)
        acc = jnp.dot(xi[0], w_ref[0], preferred_element_type=jnp.float32)
        for ph in range(1, n_ph):  # static: P-1 more small MXU dots
            acc = acc + jnp.dot(xi[ph], w_ref[ph],
                                preferred_element_type=jnp.float32)
        o_ref[i] = (acc + bias).astype(o_ref.dtype)
        return carry

    lax.fori_loop(0, x_ref.shape[0], row, 0)


def prepare_patch_embed_params(weight, bias):
    """One-time parameter prep (outside the per-call hot path).

    weight: [E, C, P, P] (PyTorch Conv2d OIHW) -> [P, P*C, E] with feature
            order (pw, c) matching the in-kernel patch slabs.
    bias:   [E] -> [1, E]
    """
    E, C, P, _ = weight.shape
    w_r = jnp.transpose(weight, (2, 3, 1, 0)).reshape(P, P * C, E)  # (ph, pw*C+c, e)
    return w_r, bias.reshape(1, E)


def _pick_row_tile(m_rows, wo, k, e, itemsize, target_rows, vmem_budget):
    """Pick TB (tile over batch*patch-rows): exact divisor of m_rows, ~target
    output rows per block, within the VMEM budget, >= 2 grid steps if free."""
    per_row = 2 * wo * (k + e) * itemsize        # double-buffered x + out per row
    fixed = 2 * (k * e + e) * itemsize           # weight + bias buffers
    max_tb_vmem = max(1, (vmem_budget - fixed) // max(per_row, 1))
    cap = max(1, min(m_rows, max(1, target_rows // max(wo, 1)), max_tb_vmem))
    tb = 1
    for cand in range(int(cap), 0, -1):          # largest divisor of m_rows <= cap
        if m_rows % cand == 0:
            tb = cand
            break
    # v7x megacore: prefer >= 2 parallel grid steps when the split stays exact.
    if m_rows // tb < 2 and m_rows % 2 == 0 and m_rows >= 2:
        tb = m_rows // 2
    return tb


def patch_embed(x, w_r, bias2d, patch_size, *, target_rows=1024,
                vmem_budget_bytes=12 * 1024 * 1024):
    """x: [B, C, H, W] (NCHW).  w_r, bias2d from prepare_patch_embed_params.
    Returns [B, num_patches, embed_dim] == proj(x).flatten(2).transpose(1, 2)."""
    B, C, H, W = x.shape
    P = patch_size
    assert H % P == 0 and W % P == 0
    Ho, Wo = H // P, W // P
    PC = P * C
    K = P * PC
    assert w_r.shape[0] == P and w_r.shape[1] == PC
    E = w_r.shape[-1]

    # --- host glue: ONE plain transpose; every reshape below is a free view ---
    x_nhwc = jnp.transpose(x, (0, 2, 3, 1))          # [B, H, W, C]
    x_rows = x_nhwc.reshape(B * Ho, P, Wo, PC)       # [(b,ho), ph, wo, (pw,c)]

    m_rows = B * Ho
    TB = _pick_row_tile(m_rows, Wo, K, E, x.dtype.itemsize,
                        target_rows, vmem_budget_bytes)
    grid = (m_rows // TB,)

    cost = pl.CostEstimate(
        flops=2 * B * Ho * Wo * K * E,
        transcendentals=0,
        bytes_accessed=x.dtype.itemsize
        * (B * Ho * Wo * K + K * E + E + B * Ho * Wo * E),
    )

    out = pl.pallas_call(
        _patch_embed_kernel,
        out_shape=jax.ShapeDtypeStruct((m_rows, Wo, E), x.dtype),
        grid_spec=pltpu.PrefetchScalarGridSpec(
            num_scalar_prefetch=0,
            grid=grid,
            in_specs=[
                # activations: a new row-block per grid step
                pl.BlockSpec((TB, P, Wo, PC), lambda r: (r, 0, 0, 0)),
                # weight + bias: constant index_map -> resident, DMA'd once
                pl.BlockSpec((P, PC, E), lambda r: (0, 0, 0)),
                pl.BlockSpec((1, E), lambda r: (0, 0)),
            ],
            out_specs=pl.BlockSpec((TB, Wo, E), lambda r: (r, 0, 0)),
        ),
        compiler_params=pltpu.CompilerParams(
            dimension_semantics=("parallel",)),
        cost_estimate=cost,
    )(x_rows, w_r, bias2d)

    # [B*Ho, Wo, E] -> [B, Ho*Wo, E]   (free reshape)
    return out.reshape(B, Ho * Wo, E)


if __name__ == "__main__":
    # Small shapes consistent with the module: img_size=16, patch_size=4,
    # in_chans=4, embed_dim=128  ->  x: [2, 4, 16, 16], out: [2, 16, 128]
    B, C, H, W = 2, 4, 16, 16
    P = 4
    E = 128

    key = jax.random.PRNGKey(0)
    kx, kw, kb = jax.random.split(key, 3)
    x = jax.random.normal(kx, (B, C, H, W), dtype=jnp.float32)
    weight = jax.random.normal(kw, (E, C, P, P), dtype=jnp.float32) * 0.02
    bias = jax.random.normal(kb, (E,), dtype=jnp.float32) * 0.02

    # One-time param prep (kept out of the per-call hot path).
    w_r, b2d = prepare_patch_embed_params(weight, bias)

    out = patch_embed(x, w_r, b2d, P)
    out = jax.block_until_ready(out)

    # Reference: lax.conv with stride=kernel=P (== nn.Conv2d), then flatten+transpose.
    ref = jax.lax.conv_general_dilated(
        x, weight, window_strides=(P, P), padding="VALID",
        dimension_numbers=("NCHW", "OIHW", "NCHW"),
    ) + bias.reshape(1, E, 1, 1)
    ref = ref.reshape(B, E, -1).transpose(0, 2, 1)

    assert out.shape == (B, (H // P) * (W // P), E)
    assert jnp.allclose(out, ref, atol=1e-4, rtol=1e-4)

    print("KERNEL_OK")
</pallas_src>

<mosaic_0001>
module attributes {stable_mosaic.version = 11 : i64} {
  func.func @_patch_embed_kernel(%arg0: i32, %arg1: memref<4x4x4x16xf32, #tpu.memory_space<vmem>>, %arg2: memref<4x16x128xf32, #tpu.memory_space<vmem>>, %arg3: memref<1x128xf32, #tpu.memory_space<vmem>>, %arg4: memref<4x4x128xf32, #tpu.memory_space<vmem>>) attributes {dimension_semantics = [#tpu.dimension_semantics<parallel>], iteration_bounds = array<i64: 2>, scalar_prefetch = 0 : i64, scratch_operands = 0 : i64, tpu.core_type = #tpu.core_type<tc>, window_params = [{transform_indices = @transform_0, window_bounds = array<i64: 4, 4, 4, 16>}, {pipeline_mode = #tpu.pipeline_mode<synchronous>, transform_indices = @transform_1, window_bounds = array<i64: 4, 16, 128>}, {pipeline_mode = #tpu.pipeline_mode<synchronous>, transform_indices = @transform_2, window_bounds = array<i64: 1, 128>}, {transform_indices = @transform_3, window_bounds = array<i64: 4, 4, 128>}]} {
    %c0 = arith.constant 0 : index
    %c0_0 = arith.constant 0 : index
    %0 = vector.load %arg3[%c0, %c0_0] : memref<1x128xf32, #tpu.memory_space<vmem>>, vector<1x128xf32>
    %c0_i32 = arith.constant 0 : i32
    %c4_i32 = arith.constant 4 : i32
    %1 = arith.addi %c0_i32, %c4_i32 : i32
    %c1_i32 = arith.constant 1 : i32
    scf.for %arg5 = %c0_i32 to %1 step %c1_i32  : i32 {
      %2 = arith.index_cast %arg5 : i32 to index
      %c0_2 = arith.constant 0 : index
      %c0_3 = arith.constant 0 : index
      %c0_4 = arith.constant 0 : index
      %3 = vector.load %arg1[%2, %c0_2, %c0_3, %c0_4] : memref<4x4x4x16xf32, #tpu.memory_space<vmem>>, vector<1x4x4x16xf32>
      %4 = vector.shape_cast %3 : vector<1x4x4x16xf32> to vector<4x4x16xf32>
      %5 = vector.extract_strided_slice %4 {offsets = [0, 0, 0], sizes = [1, 4, 16], strides = [1, 1, 1]} : vector<4x4x16xf32> to vector<1x4x16xf32>
      %6 = vector.shape_cast %5 : vector<1x4x16xf32> to vector<4x16xf32>
      %c0_5 = arith.constant 0 : index
      %c0_6 = arith.constant 0 : index
      %c0_7 = arith.constant 0 : index
      %7 = vector.load %arg2[%c0_5, %c0_6, %c0_7] : memref<4x16x128xf32, #tpu.memory_space<vmem>>, vector<1x16x128xf32>
      %8 = vector.shape_cast %7 : vector<1x16x128xf32> to vector<16x128xf32>
      %cst = arith.constant dense<0.000000e+00> : vector<4x128xf32>
      %9 = tpu.matmul %6, %8, %cst {dimension_numbers = #tpu.dot_dimension_numbers<[1], [0], [0], [1], [0, 0, 1, 1], [], []>} : vector<4x16xf32>, vector<16x128xf32>, vector<4x128xf32> -> vector<4x128xf32>
      %10 = vector.extract_strided_slice %4 {offsets = [1, 0, 0], sizes = [1, 4, 16], strides = [1, 1, 1]} : vector<4x4x16xf32> to vector<1x4x16xf32>
      %11 = vector.shape_cast %10 : vector<1x4x16xf32> to vector<4x16xf32>
      %c1 = arith.constant 1 : index
      %c0_8 = arith.constant 0 : index
      %c0_9 = arith.constant 0 : index
      %12 = vector.load %arg2[%c1, %c0_8, %c0_9] : memref<4x16x128xf32, #tpu.memory_space<vmem>>, vector<1x16x128xf32>
      %13 = vector.shape_cast %12 : vector<1x16x128xf32> to vector<16x128xf32>
      %cst_10 = arith.constant dense<0.000000e+00> : vector<4x128xf32>
      %14 = tpu.matmul %11, %13, %cst_10 {dimension_numbers = #tpu.dot_dimension_numbers<[1], [0], [0], [1], [0, 0, 1, 1], [], []>} : vector<4x16xf32>, vector<16x128xf32>, vector<4x128xf32> -> vector<4x128xf32>
      %15 = arith.addf %9, %14 : vector<4x128xf32>
      %16 = vector.extract_strided_slice %4 {offsets = [2, 0, 0], sizes = [1, 4, 16], strides = [1, 1, 1]} : vector<4x4x16xf32> to vector<1x4x16xf32>
      %17 = vector.shape_cast %16 : vector<1x4x16xf32> to vector<4x16xf32>
      %c2 = arith.constant 2 : index
      %c0_11 = arith.constant 0 : index
      %c0_12 = arith.constant 0 : index
      %18 = vector.load %arg2[%c2, %c0_11, %c0_12] : memref<4x16x128xf32, #tpu.memory_space<vmem>>, vector<1x16x128xf32>
      %19 = vector.shape_cast %18 : vector<1x16x128xf32> to vector<16x128xf32>
      %cst_13 = arith.constant dense<0.000000e+00> : vector<4x128xf32>
      %20 = tpu.matmul %17, %19, %cst_13 {dimension_numbers = #tpu.dot_dimension_numbers<[1], [0], [0], [1], [0, 0, 1, 1], [], []>} : vector<4x16xf32>, vector<16x128xf32>, vector<4x128xf32> -> vector<4x128xf32>
      %21 = arith.addf %15, %20 : vector<4x128xf32>
      %22 = vector.extract_strided_slice %4 {offsets = [3, 0, 0], sizes = [1, 4, 16], strides = [1, 1, 1]} : vector<4x4x16xf32> to vector<1x4x16xf32>
      %23 = vector.shape_cast %22 : vector<1x4x16xf32> to vector<4x16xf32>
      %c3 = arith.constant 3 : index
      %c0_14 = arith.constant 0 : index
      %c0_15 = arith.constant 0 : index
      %24 = vector.load %arg2[%c3, %c0_14, %c0_15] : memref<4x16x128xf32, #tpu.memory_space<vmem>>, vector<1x16x128xf32>
      %25 = vector.shape_cast %24 : vector<1x16x128xf32> to vector<16x128xf32>
      %cst_16 = arith.constant dense<0.000000e+00> : vector<4x128xf32>
      %26 = tpu.matmul %23, %25, %cst_16 {dimension_numbers = #tpu.dot_dimension_numbers<[1], [0], [0], [1], [0, 0, 1, 1], [], []>} : vector<4x16xf32>, vector<16x128xf32>, vector<4x128xf32> -> vector<4x128xf32>
      %27 = arith.addf %21, %26 : vector<4x128xf32>
      %28 = vector.broadcast %0 : vector<1x128xf32> to vector<4x128xf32>
      %29 = arith.addf %27, %28 : vector<4x128xf32>
      %30 = arith.index_cast %arg5 : i32 to index
      %c0_17 = arith.constant 0 : index
      %c0_18 = arith.constant 0 : index
      %31 = vector.load %arg4[%30, %c0_17, %c0_18] : memref<4x4x128xf32, #tpu.memory_space<vmem>>, vector<1x4x128xf32>
      %32 = vector.shape_cast %31 : vector<1x4x128xf32> to vector<4x128xf32>
      %33 = vector.shape_cast %29 : vector<4x128xf32> to vector<1x4x128xf32>
      tpu.vector_store %arg4[%30, %c0_17, %c0_18], %33 {strides = array<i32>} : memref<4x4x128xf32, #tpu.memory_space<vmem>>, vector<1x4x128xf32>,
    }
    %c4_i32_1 = arith.constant 4 : i32
    return
  }
  func.func @transform_0(%arg0: i32) -> (i32, i32, i32, i32) {
    %c0_i32 = arith.constant 0 : i32
    %c0_i32_0 = arith.constant 0 : i32
    %c0_i32_1 = arith.constant 0 : i32
    %c0_i32_2 = arith.constant 0 : i32
    return %arg0, %c0_i32, %c0_i32_0, %c0_i32_1 : i32, i32, i32, i32
  }
  func.func @transform_1(%arg0: i32) -> (i32, i32, i32) {
    %c0_i32 = arith.constant 0 : i32
    %c0_i32_0 = arith.constant 0 : i32
    %c0_i32_1 = arith.constant 0 : i32
    %c0_i32_2 = arith.constant 0 : i32
    return %c0_i32, %c0_i32_0, %c0_i32_1 : i32, i32, i32
  }
  func.func @transform_2(%arg0: i32) -> (i32, i32) {
    %c0_i32 = arith.constant 0 : i32
    %c0_i32_0 = arith.constant 0 : i32
    %c0_i32_1 = arith.constant 0 : i32
    return %c0_i32, %c0_i32_0 : i32, i32
  }
  func.func @transform_3(%arg0: i32) -> (i32, i32, i32) {
    %c0_i32 = arith.constant 0 : i32
    %c0_i32_0 = arith.constant 0 : i32
    %c0_i32_1 = arith.constant 0 : i32
    return %arg0, %c0_i32, %c0_i32_0 : i32, i32, i32
  }
}

</mosaic_0001>

<llo_original>
// kernel: tpu_custom_call.1
$region0: #{tpu_custom_call.1}
  #allocation0 [shape = 'u32[]', space=smem, size = 0x4, offset = 0x4, fixed_abs, tag = 'smem constant byte address 0x4 - core index']
  #allocation1 [shape = 'u32[144,128]{1,0:T(1,128)}', space=vmem, size = 0x12000, scoped, tag = 'internal scratch']
  %s0 = inlined_call_operand.hbm [shape: f32[8,4,4,16], index: 0, kind: input, shape index: {}]
  %s1 = inlined_call_operand.hbm [shape: f32[4,16,128], index: 1, kind: input, shape index: {}]
  %s2 = inlined_call_operand.vmem [shape: f32[1,128], index: 2, kind: input, shape index: {}]
  %s3 = inlined_call_operand.hbm [shape: f32[8,4,128], index: 3, kind: output, shape index: {}]
  %s4 = sld [smem:[#allocation0]]
  $region60: #{tpu_custom_call.1} parent=0
    _
  %s6 = ssub.s32 1, %s4
  %s7 = scalar_select 0, %s6, %s4
  $region1: #{tpu_custom_call.1} parent=0
    #allocation2 [shape = 'u8[65536]{0}', space=vmem, size = 0x10000, scoped, tag = 'input window, operand 0']
    #allocation3 [shape = 's32[2]{0}', space=sflag, size = 0x8, scoped, tag = 'scoped memory for tpu_custom_call.1']
    #allocation4 [shape = 's32[2]{0}', space=sflag, size = 0x8, scoped, tag = 'scoped memory for tpu_custom_call.1']
    #allocation5 [shape = 'u8[32768]{0}', space=vmem, size = 0x8000, scoped, tag = 'input window, operand 1, single buffered']
    #allocation6 [shape = 's32[1]{0}', space=sflag, size = 0x4, scoped, tag = 'scoped memory for tpu_custom_call.1']
    #allocation7 [shape = 'u8[16384]{0}', space=vmem, size = 0x4000, scoped, tag = 'output window, operand 0']
    %8 = vsyncpa [#allocation3], 0
    %s9 = scalar_lea.sflag [#allocation3], 1
    %10 = vsyncpa %s9, 0
    %11 = vsyncpa [#allocation6], 0
    %12 = vsyncpa [#allocation4], 0
    %s13 = scalar_lea.sflag [#allocation4], 1
    %14 = vsyncpa %s13, 0
    loop: start=0, step=1, limit=4
    $region2: #{tpu_custom_call.1} parent=1 // loop_pre_header
      _
    $region3: #{tpu_custom_call.1} parent=1 // loop_header
      %s16 = sphi 0, %s20
      %p17 = scmp.ge.s32.totalorder %s16, 4
      %s26 = sphi 0, %s28
      %s29 = sphi 0, %s26
      %s30 = sphi 0, %s29
      %s46 = sphi 0, %s30
      %s50 = sphi 0, %s50
      %s52 = sphi 0, %s50
      %s53 = sphi 0, %s52
      %s67 = sphi 0, %s53
      %s71 = sphi 0, %s71
      %s73 = sphi 0, %s71
      %s74 = sphi 0, %s73
      %s88 = sphi 0, %s74
      %s94 = sphi 0, %s96
      %s97 = sphi 0, %s94
      %s98 = sphi 0, %s97
      %s114 = sphi 0, %s98
    $region4: #{tpu_custom_call.1} parent=1 // loop_header_branch
      %19 = sbr.rel (%p17) target = $region8
    $region5: #{tpu_custom_call.1} parent=1 // loop_body
      %s21 = ssub.s32 %s16, 1
      %s22 = ssub.s32 %s16, 2
      %s23 = sadd.s32 %s16, 1
      %s24 = ssub.s32 %s16, %s23
      %p25 = scmp.eq.s32.totalorder %s24, 0
      %s27 = sadd.s32 %s26, 1
      %s28 = scalar_select %p25, %s26, %s27
      %p31 = pneg %p25
      %p32 = scmp.eq.s32.totalorder %s16, 1
      %p33 = por %p31, %p32
      %p34 = scmp.ne.s32.totalorder %s26, %s29
      %p35 = scmp.eq.s32.totalorder %s16, 0
      %p36 = por %p34, %p35
      %p37 = scmp.ne.s32.totalorder %s26, %s29
      %p38 = scmp.eq.s32.totalorder %s21, 1
      %p39 = por %p37, %p38
      %p40 = scmp.ne.s32.totalorder %s29, %s30
      %p41 = scmp.eq.s32.totalorder %s21, 0
      %p42 = por %p40, %p41
      %p43 = scmp.ne.s32.totalorder %s29, %s30
      %p44 = scmp.eq.s32.totalorder %s22, 1
      %p45 = por %p43, %p44
      %p47 = scmp.ne.s32.totalorder %s30, %s46
      %p48 = scmp.eq.s32.totalorder %s22, 0
      %p49 = por %p47, %p48
      %s51 = sadd.s32 %s50, 1
      %p54 = scmp.eq.s32.totalorder %s16, 1
      %p55 = scmp.ne.s32.totalorder %s50, %s52
      %p56 = scmp.eq.s32.totalorder %s16, 0
      %p57 = por %p55, %p56
      %p58 = scmp.ne.s32.totalorder %s50, %s52
      %p59 = scmp.eq.s32.totalorder %s21, 1
      %p60 = por %p58, %p59
      %p61 = scmp.ne.s32.totalorder %s52, %s53
      %p62 = scmp.eq.s32.totalorder %s21, 0
      %p63 = por %p61, %p62
      %p64 = scmp.ne.s32.totalorder %s52, %s53
      %p65 = scmp.eq.s32.totalorder %s22, 1
      %p66 = por %p64, %p65
      %p68 = scmp.ne.s32.totalorder %s53, %s67
      %p69 = scmp.eq.s32.totalorder %s22, 0
      %p70 = por %p68, %p69
      %s72 = sadd.s32 %s71, 1
      %p75 = scmp.eq.s32.totalorder %s16, 1
      %p76 = scmp.ne.s32.totalorder %s71, %s73
      %p77 = scmp.eq.s32.totalorder %s16, 0
      %p78 = por %p76, %p77
      %p79 = scmp.ne.s32.totalorder %s71, %s73
      %p80 = scmp.eq.s32.totalorder %s21, 1
      %p81 = por %p79, %p80
      %p82 = scmp.ne.s32.totalorder %s73, %s74
      %p83 = scmp.eq.s32.totalorder %s21, 0
      %p84 = por %p82, %p83
      %p85 = scmp.ne.s32.totalorder %s73, %s74
      %p86 = scmp.eq.s32.totalorder %s22, 1
      %p87 = por %p85, %p86
      %p89 = scmp.ne.s32.totalorder %s74, %s88
      %p90 = scmp.eq.s32.totalorder %s22, 0
      %p91 = por %p89, %p90
      %s92 = ssub.s32 %s16, %s23
      %p93 = scmp.eq.s32.totalorder %s92, 0
      %s95 = sadd.s32 %s94, 1
      %s96 = scalar_select %p93, %s94, %s95
      %p99 = pneg %p93
      %p100 = scmp.eq.s32.totalorder %s16, 1
      %p101 = por %p99, %p100
      %p102 = scmp.ne.s32.totalorder %s94, %s97
      %p103 = scmp.eq.s32.totalorder %s16, 0
      %p104 = por %p102, %p103
      %p105 = scmp.ne.s32.totalorder %s94, %s97
      %p106 = scmp.eq.s32.totalorder %s21, 1
      %p107 = por %p105, %p106
      %p108 = scmp.ne.s32.totalorder %s97, %s98
      %p109 = scmp.eq.s32.totalorder %s21, 0
      %p110 = por %p108, %p109
      %p111 = scmp.ne.s32.totalorder %s97, %s98
      %p112 = scmp.eq.s32.totalorder %s22, 1
      %p113 = por %p111, %p112
      %p115 = scmp.ne.s32.totalorder %s98, %s114
      %p116 = scmp.eq.s32.totalorder %s22, 0
      %p117 = por %p115, %p116
      %p118 = scmp.le.s32.totalorder 1, %s16
      %p119 = scmp.lt.s32.totalorder %s16, 3
      %p120 = pnand %p118, %p119
      %p121 = pneg %p120
      // Predicated region
      $region9: #{tpu_custom_call.1} parent=5 // pred_check
        _
      $region10: #{tpu_custom_call.1} parent=5 // pred_check_branch
        %123 = sbr.rel (%p120) target = $region12
      $region11: #{tpu_custom_call.1} parent=5 // pred_region
        %s124 = ssub.s32 %s16, 1
        // Predicated region
        $region13: #{tpu_custom_call.1} parent=11 // pred_check
          %p125 = pneg %p63
        $region14: #{tpu_custom_call.1} parent=11 // pred_check_branch
          %127 = sbr.rel (%p125) target = $region16
        $region15: #{tpu_custom_call.1} parent=11 // pred_region
          %s129 = ssub.s32 1024, 1024
          %130 = vsyncadd [#allocation6], %s129
          %s131 = sshll.u32 [#allocation5], 4
          %s132 = int_to_ptr.vmem [resolvable:$true] %s131
          %137 = dma.hbm_to_vmem [thread:$0]  %s1, 1024, %s132, [#allocation6], 128, 128, 8
        $region16: #{tpu_custom_call.1} parent=11 // pred_fallthru
          _
        // Predicated region
        $region17: #{tpu_custom_call.1} parent=11 // pred_check
          %p138 = pneg %p84
        $region18: #{tpu_custom_call.1} parent=11 // pred_check_branch
          %140 = sbr.rel (%p138) target = $region20
        $region19: #{tpu_custom_call.1} parent=11 // pred_region
          _
        $region20: #{tpu_custom_call.1} parent=11 // pred_fallthru
          _
      $region12: #{tpu_custom_call.1} parent=5 // pred_fallthru
        _
      %p141 = scmp.lt.s32.totalorder %s16, 2
      // Predicated region
      $region21: #{tpu_custom_call.1} parent=5 // pred_check
        %p142 = pneg %p141
      $region22: #{tpu_custom_call.1} parent=5 // pred_check_branch
        %144 = sbr.rel (%p142) target = $region24
      $region23: #{tpu_custom_call.1} parent=5 // pred_region
        // Predicated region
        $region25: #{tpu_custom_call.1} parent=23 // pred_check
          %p145 = pneg %p36
        $region26: #{tpu_custom_call.1} parent=23 // pred_check_branch
          %147 = sbr.rel (%p145) target = $region28
        $region27: #{tpu_custom_call.1} parent=23 // pred_region
          %s148 = sand.u32 %s26, 1
          %s149 = scalar_lea.sflag [#allocation3], %s148
          %s150 = sand.u32 %s26, 1
          %s151 = smul.addr %s150, 64
          %s152 = scalar_lea.vmem [#allocation2], %s151
          %s153 = smul.u32 4, %s16
          %s155 = ssub.s32 1024, 1024
          %156 = vsyncadd %s149, %s155
          %s157 = smul.addr %s153, 4
          %s158 = smul.addr %s157, 64
          %s159 = scalar_lea.hbm %s0, %s158
          %s160 = sshll.u32 %s152, 4
          %s161 = int_to_ptr.vmem [resolvable:$true] %s160
          %166 = dma.hbm_to_vmem [thread:$0]  %s159, 1024, %s161, %s149, 64, 64, 4
        $region28: #{tpu_custom_call.1} parent=23 // pred_fallthru
          _
      $region24: #{tpu_custom_call.1} parent=5 // pred_fallthru
        _
      %p167 = scmp.le.s32.totalorder 1, %s16
      %p168 = scmp.lt.s32.totalorder %s16, 3
      %p169 = pnand %p167, %p168
      %p170 = pneg %p169
      // Predicated region
      $region29: #{tpu_custom_call.1} parent=5 // pred_check
        _
      $region30: #{tpu_custom_call.1} parent=5 // pred_check_branch
        %172 = sbr.rel (%p169) target = $region32
      $region31: #{tpu_custom_call.1} parent=5 // pred_region
        %s173 = ssub.s32 %s16, 1
        %s174 = sand.u32 %s29, 1
        %s175 = scalar_lea.sflag [#allocation3], %s174
        %s176 = sand.u32 %s29, 1
        %s177 = smul.addr %s176, 64
        %s178 = scalar_lea.vmem [#allocation2], %s177
        // Predicated region
        $region33: #{tpu_custom_call.1} parent=31 // pred_check
          %p179 = pneg %p42
        $region34: #{tpu_custom_call.1} parent=31 // pred_check_branch
          %181 = sbr.rel (%p179) target = $region36
        $region35: #{tpu_custom_call.1} parent=31 // pred_region
          %182 = dma.done %s175, 1024
        $region36: #{tpu_custom_call.1} parent=31 // pred_fallthru
          _
        // Predicated region
        $region37: #{tpu_custom_call.1} parent=31 // pred_check
          %p183 = pneg %p63
        $region38: #{tpu_custom_call.1} parent=31 // pred_check_branch
          %185 = sbr.rel (%p183) target = $region40
        $region39: #{tpu_custom_call.1} parent=31 // pred_region
          %186 = dma.done [#allocation6], 1024
        $region40: #{tpu_custom_call.1} parent=31 // pred_fallthru
          _
        %s187 = sand.u32 %s29, 1
        %s188 = scalar_lea.sflag [#allocation3], %s187
        %s189 = sand.u32 %s29, 1
        %s190 = smul.addr %s189, 64
        %s191 = scalar_lea.vmem [#allocation2], %s190
        %p192 = pneg %p42
        %p193 = pneg %p39
        %p194 = pneg %p63
        %p195 = pneg %p60
        %p196 = pneg %p84
        %p197 = pneg %p81
        %p198 = pneg %p110
        %p199 = pneg %p107
        %s200 = sand.u32 %s97, 1
        %s201 = scalar_lea.sflag [#allocation4], %s200
        %s202 = sand.u32 %s97, 1
        %s203 = smul.addr %s202, 16
        %s204 = scalar_lea.vmem [#allocation7], %s203
        %s205 = smul.u32 4, %s21
        %s206 = smul.u32 4, %s21
        %v207 = vld [vmem:[%s2] sm:$0x1]
        loop: start=0, step=1, limit=4
        $region41: #{tpu_custom_call.1} parent=31 // loop_pre_header
          _
        $region42: #{tpu_custom_call.1} parent=31 // loop_header
          %s209 = sphi 0, %s213
          %p210 = scmp.ge.s32.totalorder %s209, 4
        $region43: #{tpu_custom_call.1} parent=31 // loop_header_branch
          %212 = sbr.rel (%p210) target = $region47
        $region44: #{tpu_custom_call.1} parent=31 // loop_body
          %s214 = smul.u32 %s209, 16
          %s215 = scalar_lea.vmem %s178, %s214 [#allocation2]
          %v216 = vld [vmem:[%s215] sm:$0xf]
          %v217 = vld [vmem:[%s215 + $0x4] sm:$0xf]
          %v218 = vld [vmem:[%s215 + $0x8] sm:$0xf]
          %v219 = vld [vmem:[%s215 + $0xc] sm:$0xf]
          %v220 = vld [vmem:[#allocation5] sm:$0xff]
          %v221 = vld [vmem:[#allocation5 + $0x8] sm:$0xff]
          %s222 = scalar_lea.vmem [#allocation5], 16
          %v223 = vld [vmem:[%s222] sm:$0xff]
          %v224 = vld [vmem:[%s222 + $0x8] sm:$0xff]
          %vm225 = vcmask 130048
          %v227 = vsel %vm225, %v217, 0
          %229 = vmatprep.subr.mxu0 0.0
          %230 = vmatpush1.msra.mxu0 0.0
          %231 = vmatprep.subr.mxu0 0.0
          %232 = vmatpush1.msra.mxu0 0.0
          %233 = vmatprep.subr.mxu0 0.0
          %234 = vmatpush1.msra.mxu0 0.0
          %235 = vmatprep.subr.mxu0 0.0
          %236 = vmatpush1.msra.mxu0 0.0
          %237 = vmatprep.subr.mxu0 0.0
          %238 = vmatpush1.msra.mxu0 0.0
          %239 = vmatprep.subr.mxu0 0.0
          %240 = vmatpush1.msra.mxu0 0.0
          %241 = vmatprep.subr.mxu0 0.0
          %242 = vmatpush1.msra.mxu0 0.0
          %243 = vmatprep.subr.mxu0 0.0
          %244 = vmatpush1.msra.mxu0 0.0
          %245 = vmatprep.subr.mxu0 0.0
          %246 = vmatpush1.msra.mxu0 0.0
          %247 = vmatprep.subr.mxu0 0.0
          %248 = vmatpush1.msra.mxu0 0.0
          %249 = vmatprep.subr.mxu0 0.0
          %250 = vmatpush1.msra.mxu0 0.0
          %251 = vmatprep.subr.mxu0 0.0
          %252 = vmatpush1.msra.mxu0 0.0
          %253 = vmatprep.subr.mxu0 0.0
          %254 = vmatpush1.msra.mxu0 0.0
          %255 = vmatprep.subr.mxu0 0.0
          %256 = vmatpush1.msra.mxu0 0.0
          %257 = vmatprep.subr.mxu0 0.0
          %258 = vmatpush1.msra.mxu0 %v224
          %259 = vmatprep.subr.mxu0 0.0
          %260 = vmatpush1.msra.mxu0 %v223
          %261 = vmatprep.subr.mxu0 0.0
          %262 = vmatpush2.msra.mxu0 0.0
          %263 = vmatprep.subr.mxu0 0.0
          %264 = vmatpush2.msra.mxu0 0.0
          %265 = vmatprep.subr.mxu0 0.0
          %266 = vmatpush2.msra.mxu0 0.0
          %267 = vmatprep.subr.mxu0 0.0
          %268 = vmatpush2.msra.mxu0 0.0
          %269 = vmatprep.subr.mxu0 0.0
          %270 = vmatpush2.msra.mxu0 0.0
          %271 = vmatprep.subr.mxu0 0.0
          %272 = vmatpush2.msra.mxu0 0.0
          %273 = vmatprep.subr.mxu0 0.0
          %274 = vmatpush2.msra.mxu0 0.0
          %275 = vmatprep.subr.mxu0 0.0
          %276 = vmatpush2.msra.mxu0 0.0
          %277 = vmatprep.subr.mxu0 0.0
          %278 = vmatpush2.msra.mxu0 0.0
          %279 = vmatprep.subr.mxu0 0.0
          %280 = vmatpush2.msra.mxu0 0.0
          %281 = vmatprep.subr.mxu0 0.0
          %282 = vmatpush2.msra.mxu0 0.0
          %283 = vmatprep.subr.mxu0 0.0
          %284 = vmatpush2.msra.mxu0 0.0
          %285 = vmatprep.subr.mxu0 0.0
          %286 = vmatpush2.msra.mxu0 0.0
          %287 = vmatprep.subr.mxu0 0.0
          %288 = vmatpush2.msra.mxu0 0.0
          %289 = vmatprep.subr.mxu0 0.0
          %290 = vmatpush2.msra.mxu0 0.0
          %291 = vmatprep.subr.mxu0 0.0
          %292 = vmatpush2.msra.mxu0 0.0
          %293 = vmatprep.mubr.f32.mxu0 0.0
          %294 = vmatmul.mubr.f32.gmra.mxu0 %v227
          %v295 = vpop.f32.mrf.mxu0
          %v296 = vadd.f32 0.0, %v295
          %v297 = vpop.f32.mrf.mxu0
          %298 = vdwg.mxu0
          %v300 = vsel %vm225, %v216, 0
          %302 = vmatprep.subr.mxu0 0.0
          %303 = vmatpush1.msra.mxu0 0.0
          %304 = vmatprep.subr.mxu0 0.0
          %305 = vmatpush1.msra.mxu0 0.0
          %306 = vmatprep.subr.mxu0 0.0
          %307 = vmatpush1.msra.mxu0 0.0
          %308 = vmatprep.subr.mxu0 0.0
          %309 = vmatpush1.msra.mxu0 0.0
          %310 = vmatprep.subr.mxu0 0.0
          %311 = vmatpush1.msra.mxu0 0.0
          %312 = vmatprep.subr.mxu0 0.0
          %313 = vmatpush1.msra.mxu0 0.0
          %314 = vmatprep.subr.mxu0 0.0
          %315 = vmatpush1.msra.mxu0 0.0
          %316 = vmatprep.subr.mxu0 0.0
          %317 = vmatpush1.msra.mxu0 0.0
          %318 = vmatprep.subr.mxu0 0.0
          %319 = vmatpush1.msra.mxu0 0.0
          %320 = vmatprep.subr.mxu0 0.0
          %321 = vmatpush1.msra.mxu0 0.0
          %322 = vmatprep.subr.mxu0 0.0
          %323 = vmatpush1.msra.mxu0 0.0
          %324 = vmatprep.subr.mxu0 0.0
          %325 = vmatpush1.msra.mxu0 0.0
          %326 = vmatprep.subr.mxu0 0.0
          %327 = vmatpush1.msra.mxu0 0.0
          %328 = vmatprep.subr.mxu0 0.0
          %329 = vmatpush1.msra.mxu0 0.0
          %330 = vmatprep.subr.mxu0 0.0
          %331 = vmatpush1.msra.mxu0 %v221
          %332 = vmatprep.subr.mxu0 0.0
          %333 = vmatpush1.msra.mxu0 %v220
          %334 = vmatprep.subr.mxu0 0.0
          %335 = vmatpush2.msra.mxu0 0.0
          %336 = vmatprep.subr.mxu0 0.0
          %337 = vmatpush2.msra.mxu0 0.0
          %338 = vmatprep.subr.mxu0 0.0
          %339 = vmatpush2.msra.mxu0 0.0
          %340 = vmatprep.subr.mxu0 0.0
          %341 = vmatpush2.msra.mxu0 0.0
          %342 = vmatprep.subr.mxu0 0.0
          %343 = vmatpush2.msra.mxu0 0.0
          %344 = vmatprep.subr.mxu0 0.0
          %345 = vmatpush2.msra.mxu0 0.0
          %346 = vmatprep.subr.mxu0 0.0
          %347 = vmatpush2.msra.mxu0 0.0
          %348 = vmatprep.subr.mxu0 0.0
          %349 = vmatpush2.msra.mxu0 0.0
          %350 = vmatprep.subr.mxu0 0.0
          %351 = vmatpush2.msra.mxu0 0.0
          %352 = vmatprep.subr.mxu0 0.0
          %353 = vmatpush2.msra.mxu0 0.0
          %354 = vmatprep.subr.mxu0 0.0
          %355 = vmatpush2.msra.mxu0 0.0
          %356 = vmatprep.subr.mxu0 0.0
          %357 = vmatpush2.msra.mxu0 0.0
          %358 = vmatprep.subr.mxu0 0.0
          %359 = vmatpush2.msra.mxu0 0.0
          %360 = vmatprep.subr.mxu0 0.0
          %361 = vmatpush2.msra.mxu0 0.0
          %362 = vmatprep.subr.mxu0 0.0
          %363 = vmatpush2.msra.mxu0 0.0
          %364 = vmatprep.subr.mxu0 0.0
          %365 = vmatpush2.msra.mxu0 0.0
          %366 = vmatprep.mubr.f32.mxu0 0.0
          %367 = vmatmul.mubr.f32.gmra.mxu0 %v300
          %v368 = vpop.f32.mrf.mxu0
          %v369 = vadd.f32 %v296, %v368
          %v370 = vpop.f32.mrf.mxu0
          %371 = vdwg.mxu0
          %s372 = scalar_lea.vmem [#allocation5], 32
          %v373 = vld [vmem:[%s372] sm:$0xff]
          %v374 = vld [vmem:[%s372 + $0x8] sm:$0xff]
          %v376 = vsel %vm225, %v218, 0
          %378 = vmatprep.subr.mxu0 0.0
          %379 = vmatpush1.msra.mxu0 0.0
          %380 = vmatprep.subr.mxu0 0.0
          %381 = vmatpush1.msra.mxu0 0.0
          %382 = vmatprep.subr.mxu0 0.0
          %383 = vmatpush1.msra.mxu0 0.0
          %384 = vmatprep.subr.mxu0 0.0
          %385 = vmatpush1.msra.mxu0 0.0
          %386 = vmatprep.subr.mxu0 0.0
          %387 = vmatpush1.msra.mxu0 0.0
          %388 = vmatprep.subr.mxu0 0.0
          %389 = vmatpush1.msra.mxu0 0.0
          %390 = vmatprep.subr.mxu0 0.0
          %391 = vmatpush1.msra.mxu0 0.0
          %392 = vmatprep.subr.mxu0 0.0
          %393 = vmatpush1.msra.mxu0 0.0
          %394 = vmatprep.subr.mxu0 0.0
          %395 = vmatpush1.msra.mxu0 0.0
          %396 = vmatprep.subr.mxu0 0.0
          %397 = vmatpush1.msra.mxu0 0.0
          %398 = vmatprep.subr.mxu0 0.0
          %399 = vmatpush1.msra.mxu0 0.0
          %400 = vmatprep.subr.mxu0 0.0
          %401 = vmatpush1.msra.mxu0 0.0
          %402 = vmatprep.subr.mxu0 0.0
          %403 = vmatpush1.msra.mxu0 0.0
          %404 = vmatprep.subr.mxu0 0.0
          %405 = vmatpush1.msra.mxu0 0.0
          %406 = vmatprep.subr.mxu0 0.0
          %407 = vmatpush1.msra.mxu0 %v374
          %408 = vmatprep.subr.mxu0 0.0
          %409 = vmatpush1.msra.mxu0 %v373
          %410 = vmatprep.subr.mxu0 0.0
          %411 = vmatpush2.msra.mxu0 0.0
          %412 = vmatprep.subr.mxu0 0.0
          %413 = vmatpush2.msra.mxu0 0.0
          %414 = vmatprep.subr.mxu0 0.0
          %415 = vmatpush2.msra.mxu0 0.0
          %416 = vmatprep.subr.mxu0 0.0
          %417 = vmatpush2.msra.mxu0 0.0
          %418 = vmatprep.subr.mxu0 0.0
          %419 = vmatpush2.msra.mxu0 0.0
          %420 = vmatprep.subr.mxu0 0.0
          %421 = vmatpush2.msra.mxu0 0.0
          %422 = vmatprep.subr.mxu0 0.0
          %423 = vmatpush2.msra.mxu0 0.0
          %424 = vmatprep.subr.mxu0 0.0
          %425 = vmatpush2.msra.mxu0 0.0
          %426 = vmatprep.subr.mxu0 0.0
          %427 = vmatpush2.msra.mxu0 0.0
          %428 = vmatprep.subr.mxu0 0.0
          %429 = vmatpush2.msra.mxu0 0.0
          %430 = vmatprep.subr.mxu0 0.0
          %431 = vmatpush2.msra.mxu0 0.0
          %432 = vmatprep.subr.mxu0 0.0
          %433 = vmatpush2.msra.mxu0 0.0
          %434 = vmatprep.subr.mxu0 0.0
          %435 = vmatpush2.msra.mxu0 0.0
          %436 = vmatprep.subr.mxu0 0.0
          %437 = vmatpush2.msra.mxu0 0.0
          %438 = vmatprep.subr.mxu0 0.0
          %439 = vmatpush2.msra.mxu0 0.0
          %440 = vmatprep.subr.mxu0 0.0
          %441 = vmatpush2.msra.mxu0 0.0
          %442 = vmatprep.mubr.f32.mxu0 0.0
          %443 = vmatmul.mubr.f32.gmra.mxu0 %v376
          %v444 = vpop.f32.mrf.mxu0
          %v445 = vadd.f32 0.0, %v444
          %v446 = vpop.f32.mrf.mxu0
          %447 = vdwg.mxu0
          %v448 = vadd.f32 %v369, %v445
          %s449 = scalar_lea.vmem [#allocation5], 48
          %v450 = vld [vmem:[%s449] sm:$0xff]
          %v451 = vld [vmem:[%s449 + $0x8] sm:$0xff]
          %v453 = vsel %vm225, %v219, 0
          %455 = vmatprep.subr.mxu0 0.0
          %456 = vmatpush1.msra.mxu0 0.0
          %457 = vmatprep.subr.mxu0 0.0
          %458 = vmatpush1.msra.mxu0 0.0
          %459 = vmatprep.subr.mxu0 0.0
          %460 = vmatpush1.msra.mxu0 0.0
          %461 = vmatprep.subr.mxu0 0.0
          %462 = vmatpush1.msra.mxu0 0.0
          %463 = vmatprep.subr.mxu0 0.0
          %464 = vmatpush1.msra.mxu0 0.0
          %465 = vmatprep.subr.mxu0 0.0
          %466 = vmatpush1.msra.mxu0 0.0
          %467 = vmatprep.subr.mxu0 0.0
          %468 = vmatpush1.msra.mxu0 0.0
          %469 = vmatprep.subr.mxu0 0.0
          %470 = vmatpush1.msra.mxu0 0.0
          %471 = vmatprep.subr.mxu0 0.0
          %472 = vmatpush1.msra.mxu0 0.0
          %473 = vmatprep.subr.mxu0 0.0
          %474 = vmatpush1.msra.mxu0 0.0
          %475 = vmatprep.subr.mxu0 0.0
          %476 = vmatpush1.msra.mxu0 0.0
          %477 = vmatprep.subr.mxu0 0.0
          %478 = vmatpush1.msra.mxu0 0.0
          %479 = vmatprep.subr.mxu0 0.0
          %480 = vmatpush1.msra.mxu0 0.0
          %481 = vmatprep.subr.mxu0 0.0
          %482 = vmatpush1.msra.mxu0 0.0
          %483 = vmatprep.subr.mxu0 0.0
          %484 = vmatpush1.msra.mxu0 %v451
          %485 = vmatprep.subr.mxu0 0.0
          %486 = vmatpush1.msra.mxu0 %v450
          %487 = vmatprep.subr.mxu0 0.0
          %488 = vmatpush2.msra.mxu0 0.0
          %489 = vmatprep.subr.mxu0 0.0
          %490 = vmatpush2.msra.mxu0 0.0
          %491 = vmatprep.subr.mxu0 0.0
          %492 = vmatpush2.msra.mxu0 0.0
          %493 = vmatprep.subr.mxu0 0.0
          %494 = vmatpush2.msra.mxu0 0.0
          %495 = vmatprep.subr.mxu0 0.0
          %496 = vmatpush2.msra.mxu0 0.0
          %497 = vmatprep.subr.mxu0 0.0
          %498 = vmatpush2.msra.mxu0 0.0
          %499 = vmatprep.subr.mxu0 0.0
          %500 = vmatpush2.msra.mxu0 0.0
          %501 = vmatprep.subr.mxu0 0.0
          %502 = vmatpush2.msra.mxu0 0.0
          %503 = vmatprep.subr.mxu0 0.0
          %504 = vmatpush2.msra.mxu0 0.0
          %505 = vmatprep.subr.mxu0 0.0
          %506 = vmatpush2.msra.mxu0 0.0
          %507 = vmatprep.subr.mxu0 0.0
          %508 = vmatpush2.msra.mxu0 0.0
          %509 = vmatprep.subr.mxu0 0.0
          %510 = vmatpush2.msra.mxu0 0.0
          %511 = vmatprep.subr.mxu0 0.0
          %512 = vmatpush2.msra.mxu0 0.0
          %513 = vmatprep.subr.mxu0 0.0
          %514 = vmatpush2.msra.mxu0 0.0
          %515 = vmatprep.subr.mxu0 0.0
          %516 = vmatpush2.msra.mxu0 0.0
          %517 = vmatprep.subr.mxu0 0.0
          %518 = vmatpush2.msra.mxu0 0.0
          %519 = vmatprep.mubr.f32.mxu0 0.0
          %520 = vmatmul.mubr.f32.gmra.mxu0 %v453
          %v521 = vpop.f32.mrf.mxu0
          %v522 = vadd.f32 0.0, %v521
          %v523 = vpop.f32.mrf.mxu0
          %524 = vdwg.mxu0
          %v525 = vadd.f32 %v448, %v522
          %v527 = vlaneseq
          %v528 = vshrl.u32 %v527, 7
          %v529 = vsub.s32 0, %v528
          %v530 = vrot.slane %v207, %v529
          %v532 = vadd.f32 %v525, %v530
          %s533 = smul.u32 %s209, 4
          %s534 = scalar_lea.vmem %s204, %s533 [#allocation7]
          %535 = vst [vmem:[%s534] sm:$0xf] %v532
        $region45: #{tpu_custom_call.1} parent=31 // loop_footer
          %s213 = sadd.s32 1, %s209
        $region46: #{tpu_custom_call.1} parent=31 // loop_footer_branch
          %208 = sbr.rel target = $region42
        $region47: #{tpu_custom_call.1} parent=31 // loop_exit
          _
        %s536 = sand.u32 %s97, 1
        %s537 = scalar_lea.sflag [#allocation4], %s536
        %s538 = sand.u32 %s97, 1
        %s539 = smul.addr %s538, 16
        %s540 = scalar_lea.vmem [#allocation7], %s539
        // Predicated region
        $region48: #{tpu_custom_call.1} parent=31 // pred_check
          %p541 = pneg %p107
        $region49: #{tpu_custom_call.1} parent=31 // pred_check_branch
          %543 = sbr.rel (%p541) target = $region51
        $region50: #{tpu_custom_call.1} parent=31 // pred_region
          %s544 = smul.u32 4, %s21
          %s546 = ssub.s32 256, 256
          %547 = vsyncadd %s537, %s546
          %s548 = smul.addr %s544, 64
          %s549 = scalar_lea.hbm %s3, %s548
          %s550 = sshll.u32 %s540, 4
          %s551 = int_to_ptr.vmem [resolvable:$true] %s550
          %556 = dma.vmem_to_hbm [thread:$0]  %s551, 256, %s549, %s537, 64, 64, 4
        $region51: #{tpu_custom_call.1} parent=31 // pred_fallthru
          _
      $region32: #{tpu_custom_call.1} parent=5 // pred_fallthru
        _
      %p557 = scmp.le.s32.totalorder 2, %s16
      // Predicated region
      $region52: #{tpu_custom_call.1} parent=5 // pred_check
        %p558 = pneg %p557
      $region53: #{tpu_custom_call.1} parent=5 // pred_check_branch
        %560 = sbr.rel (%p558) target = $region55
      $region54: #{tpu_custom_call.1} parent=5 // pred_region
        %s561 = ssub.s32 %s16, 2
        // Predicated region
        $region56: #{tpu_custom_call.1} parent=54 // pred_check
          %p562 = pneg %p113
        $region57: #{tpu_custom_call.1} parent=54 // pred_check_branch
          %564 = sbr.rel (%p562) target = $region59
        $region58: #{tpu_custom_call.1} parent=54 // pred_region
          %s565 = sand.u32 %s98, 1
          %s566 = scalar_lea.sflag [#allocation4], %s565
          %s567 = sand.u32 %s98, 1
          %s568 = smul.addr %s567, 16
          %s569 = scalar_lea.vmem [#allocation7], %s568
          %570 = dma.done %s566, 256
        $region59: #{tpu_custom_call.1} parent=54 // pred_fallthru
          _
      $region55: #{tpu_custom_call.1} parent=5 // pred_fallthru
        _
    $region6: #{tpu_custom_call.1} parent=1 // loop_footer
      %s20 = sadd.s32 1, %s16
    $region7: #{tpu_custom_call.1} parent=1 // loop_footer_branch
      %15 = sbr.rel target = $region3
    $region8: #{tpu_custom_call.1} parent=1 // loop_exit
      _
    %571 = vsyncpa [#allocation3], 1
    %s572 = scalar_lea.sflag [#allocation3], 1
    %573 = vsyncpa %s572, 1
    %574 = vsyncpa [#allocation6], 1
    %575 = vsyncpa [#allocation4], 1
    %s576 = scalar_lea.sflag [#allocation4], 1
    %577 = vsyncpa %s576, 1

</llo_original>
